<compile_context>
chip_gen: v7x
topology: tpu7x:2x2x1
jax: 0.10.0
libtpu: 0.0.40
codegen_flags: <defaults>
</compile_context>

<pallas_src>
import jax
import jax.numpy as jnp
from jax.experimental import pallas as pl
from jax.experimental.pallas import tpu as pltpu


def _attention_kernel(x_ref, d_ref, w1t_ref, w2t_ref, v_ref, o_ref):
    # x_ref:   (S, H)  static_hidden for this batch element
    # d_ref:   (1, H)  decoder_hidden for this batch element
    # w1t_ref: (H, H)  W[:, :H]^T  (static-feature weights, pre-transposed)
    # w2t_ref: (H, H)  W[:, H:]^T  (decoder-feature weights, pre-transposed)
    # v_ref:   (1, H)
    # o_ref:   (1, S)  softmax attention weights (lane-dense over S)
    x = x_ref[...]
    u = jnp.dot(x, w1t_ref[...], preferred_element_type=jnp.float32)          # (S, H)
    u = u + jnp.dot(d_ref[...], w2t_ref[...],
                    preferred_element_type=jnp.float32)                        # + (1, H)
    t = jnp.tanh(u)                                                            # (S, H)

    # score[0, l] = sum_h v[0, h] * t[l, h]   ->  (1, S)
    score = jax.lax.dot_general(
        v_ref[...], t,
        dimension_numbers=(((1,), (1,)), ((), ())),
        preferred_element_type=jnp.float32)                                    # (1, S)

    # Numerically stable softmax over the node (lane) axis.
    m = jnp.max(score, axis=-1, keepdims=True)
    e = jnp.exp(score - m)
    s = jnp.sum(e, axis=-1, keepdims=True)
    o_ref[...] = (e / s).astype(o_ref.dtype)


def attention_forward(static_hidden, decoder_hidden, v, W):
    """Attention forward.

    Args:
      static_hidden:  (B, S, H) float32
      decoder_hidden: (B, 1, H) float32
      v:              (1, 1, H) float32  (PyTorch parameter layout)
      W:              (1, H, 2H) float32 (PyTorch parameter layout)
    Returns:
      attns: (B, 1, S) float32, softmax over S.
    """
    B, S, H = static_hidden.shape

    # One-time, tiny parameter prep (H x H): split W into the static / decoder
    # halves and pre-transpose so the in-kernel dots are standard (M,K)@(K,N).
    W2d = W[0]                               # (H, 2H)
    w1t = jnp.transpose(W2d[:, :H])          # (H, H)
    w2t = jnp.transpose(W2d[:, H:])          # (H, H)
    v_row = v[0]                             # (1, H)

    return pl.pallas_call(
        _attention_kernel,
        out_shape=jax.ShapeDtypeStruct((B, 1, S), static_hidden.dtype),
        grid=(B,),
        in_specs=[
            pl.BlockSpec((None, S, H), lambda b: (b, 0, 0)),   # static, streamed
            pl.BlockSpec((None, 1, H), lambda b: (b, 0, 0)),   # decoder, streamed
            pl.BlockSpec((H, H), lambda b: (0, 0)),            # W1^T, resident
            pl.BlockSpec((H, H), lambda b: (0, 0)),            # W2^T, resident
            pl.BlockSpec((1, H), lambda b: (0, 0)),            # v, resident
        ],
        out_specs=pl.BlockSpec((None, 1, S), lambda b: (b, 0, 0)),
        compiler_params=pltpu.CompilerParams(
            dimension_semantics=("parallel",)),
    )(static_hidden, decoder_hidden, w1t, w2t, v_row)


if __name__ == "__main__":
    # Small shapes consistent with the module: batch=2, seq(nodes)=8, hidden=32.
    B, S, H = 2, 8, 32

    key = jax.random.PRNGKey(0)
    ks, kd, kv, kw = jax.random.split(key, 4)

    static_hidden = jax.random.normal(ks, (B, S, H), dtype=jnp.float32)
    decoder_hidden = jax.random.normal(kd, (B, 1, H), dtype=jnp.float32)

    # PyTorch initializes these parameters to zeros (degenerate uniform softmax);
    # use small random values so the correctness check is meaningful.
    v = 0.1 * jax.random.normal(kv, (1, 1, H), dtype=jnp.float32)
    W = 0.1 * jax.random.normal(kw, (1, H, 2 * H), dtype=jnp.float32)

    out = attention_forward(static_hidden, decoder_hidden, v, W)
    jax.block_until_ready(out)

    # Plain-JAX reference of the exact PyTorch forward.
    hidden = jnp.concatenate(
        [static_hidden, jnp.broadcast_to(decoder_hidden, static_hidden.shape)],
        axis=2)                                            # (B, S, 2H)
    u = jnp.einsum("hk,bsk->bhs", W[0], hidden)            # (B, H, S)
    scores = jnp.einsum("h,bhs->bs", v[0, 0], jnp.tanh(u))  # (B, S)
    ref = jax.nn.softmax(scores, axis=-1)[:, None, :]       # (B, 1, S)

    assert out.shape == (B, 1, S)
    assert jnp.allclose(out, ref, atol=1e-4, rtol=1e-4), (
        float(jnp.max(jnp.abs(out - ref))))
    print("KERNEL_OK")
</pallas_src>

<mosaic_0001>
module attributes {stable_mosaic.version = 11 : i64} {
  func.func @_attention_kernel(%arg0: i32, %arg1: memref<1x8x32xf32, #tpu.memory_space<vmem>>, %arg2: memref<1x1x32xf32, #tpu.memory_space<vmem>>, %arg3: memref<32x32xf32, #tpu.memory_space<vmem>>, %arg4: memref<32x32xf32, #tpu.memory_space<vmem>>, %arg5: memref<1x32xf32, #tpu.memory_space<vmem>>, %arg6: memref<1x1x8xf32, #tpu.memory_space<vmem>>) attributes {dimension_semantics = [#tpu.dimension_semantics<parallel>], iteration_bounds = array<i64: 2>, scalar_prefetch = 0 : i64, scratch_operands = 0 : i64, tpu.core_type = #tpu.core_type<tc>, window_params = [{transform_indices = @transform_0, window_bounds = array<i64: 1, 8, 32>}, {transform_indices = @transform_1, window_bounds = array<i64: 1, 1, 32>}, {pipeline_mode = #tpu.pipeline_mode<synchronous>, transform_indices = @transform_2, window_bounds = array<i64: 32, 32>}, {pipeline_mode = #tpu.pipeline_mode<synchronous>, transform_indices = @transform_3, window_bounds = array<i64: 32, 32>}, {pipeline_mode = #tpu.pipeline_mode<synchronous>, transform_indices = @transform_4, window_bounds = array<i64: 1, 32>}, {transform_indices = @transform_5, window_bounds = array<i64: 1, 1, 8>}]} {
    %c0 = arith.constant 0 : index
    %c0_0 = arith.constant 0 : index
    %c0_1 = arith.constant 0 : index
    %0 = vector.load %arg1[%c0, %c0_0, %c0_1] : memref<1x8x32xf32, #tpu.memory_space<vmem>>, vector<1x8x32xf32>
    %1 = vector.shape_cast %0 : vector<1x8x32xf32> to vector<8x32xf32>
    %c0_2 = arith.constant 0 : index
    %c0_3 = arith.constant 0 : index
    %2 = vector.load %arg3[%c0_2, %c0_3] : memref<32x32xf32, #tpu.memory_space<vmem>>, vector<32x32xf32>
    %cst = arith.constant dense<0.000000e+00> : vector<8x32xf32>
    %3 = tpu.matmul %1, %2, %cst {dimension_numbers = #tpu.dot_dimension_numbers<[1], [0], [0], [1], [0, 0, 1, 1], [], []>} : vector<8x32xf32>, vector<32x32xf32>, vector<8x32xf32> -> vector<8x32xf32>
    %c0_4 = arith.constant 0 : index
    %c0_5 = arith.constant 0 : index
    %c0_6 = arith.constant 0 : index
    %4 = vector.load %arg2[%c0_4, %c0_5, %c0_6] : memref<1x1x32xf32, #tpu.memory_space<vmem>>, vector<1x1x32xf32>
    %5 = vector.shape_cast %4 : vector<1x1x32xf32> to vector<1x32xf32>
    %c0_7 = arith.constant 0 : index
    %c0_8 = arith.constant 0 : index
    %6 = vector.load %arg4[%c0_7, %c0_8] : memref<32x32xf32, #tpu.memory_space<vmem>>, vector<32x32xf32>
    %cst_9 = arith.constant dense<0.000000e+00> : vector<1x32xf32>
    %7 = tpu.matmul %5, %6, %cst_9 {dimension_numbers = #tpu.dot_dimension_numbers<[1], [0], [0], [1], [0, 0, 1, 1], [], []>} : vector<1x32xf32>, vector<32x32xf32>, vector<1x32xf32> -> vector<1x32xf32>
    %8 = vector.broadcast %7 : vector<1x32xf32> to vector<8x32xf32>
    %9 = arith.addf %3, %8 : vector<8x32xf32>
    %10 = math.tanh %9 : vector<8x32xf32>
    %c0_10 = arith.constant 0 : index
    %c0_11 = arith.constant 0 : index
    %11 = vector.load %arg5[%c0_10, %c0_11] : memref<1x32xf32, #tpu.memory_space<vmem>>, vector<1x32xf32>
    %cst_12 = arith.constant dense<0.000000e+00> : vector<1x8xf32>
    %12 = tpu.matmul %11, %10, %cst_12 {dimension_numbers = #tpu.dot_dimension_numbers<[1], [1], [0], [0], [0, 0, 1, 0], [], []>} : vector<1x32xf32>, vector<8x32xf32>, vector<1x8xf32> -> vector<1x8xf32>
    %cst_13 = arith.constant dense<0xFF800000> : vector<1xf32>
    %13 = vector.multi_reduction <maximumf>, %12, %cst_13 [1] : vector<1x8xf32> to vector<1xf32>
    %14 = vector.shape_cast %13 : vector<1xf32> to vector<1x1xf32>
    %15 = vector.broadcast %14 : vector<1x1xf32> to vector<1x8xf32>
    %16 = arith.subf %12, %15 : vector<1x8xf32>
    %17 = math.exp %16 : vector<1x8xf32>
    %cst_14 = arith.constant dense<0.000000e+00> : vector<1xf32>
    %18 = vector.multi_reduction <add>, %17, %cst_14 [1] : vector<1x8xf32> to vector<1xf32>
    %19 = vector.shape_cast %18 : vector<1xf32> to vector<1x1xf32>
    %20 = vector.broadcast %19 : vector<1x1xf32> to vector<1x8xf32>
    %21 = arith.divf %17, %20 : vector<1x8xf32>
    %c0_15 = arith.constant 0 : index
    %c0_16 = arith.constant 0 : index
    %c0_17 = arith.constant 0 : index
    %22 = vector.load %arg6[%c0_15, %c0_16, %c0_17] : memref<1x1x8xf32, #tpu.memory_space<vmem>>, vector<1x1x8xf32>
    %23 = vector.shape_cast %22 : vector<1x1x8xf32> to vector<1x8xf32>
    %24 = vector.shape_cast %21 : vector<1x8xf32> to vector<1x1x8xf32>
    tpu.vector_store %arg6[%c0_15, %c0_16, %c0_17], %24 {strides = array<i32>} : memref<1x1x8xf32, #tpu.memory_space<vmem>>, vector<1x1x8xf32>,
    return
  }
  func.func @transform_0(%arg0: i32) -> (i32, i32, i32) {
    %c0_i32 = arith.constant 0 : i32
    %c0_i32_0 = arith.constant 0 : i32
    %c0_i32_1 = arith.constant 0 : i32
    return %arg0, %c0_i32, %c0_i32_0 : i32, i32, i32
  }
  func.func @transform_1(%arg0: i32) -> (i32, i32, i32) {
    %c0_i32 = arith.constant 0 : i32
    %c0_i32_0 = arith.constant 0 : i32
    %c0_i32_1 = arith.constant 0 : i32
    return %arg0, %c0_i32, %c0_i32_0 : i32, i32, i32
  }
  func.func @transform_2(%arg0: i32) -> (i32, i32) {
    %c0_i32 = arith.constant 0 : i32
    %c0_i32_0 = arith.constant 0 : i32
    %c0_i32_1 = arith.constant 0 : i32
    return %c0_i32, %c0_i32_0 : i32, i32
  }
  func.func @transform_3(%arg0: i32) -> (i32, i32) {
    %c0_i32 = arith.constant 0 : i32
    %c0_i32_0 = arith.constant 0 : i32
    %c0_i32_1 = arith.constant 0 : i32
    return %c0_i32, %c0_i32_0 : i32, i32
  }
  func.func @transform_4(%arg0: i32) -> (i32, i32) {
    %c0_i32 = arith.constant 0 : i32
    %c0_i32_0 = arith.constant 0 : i32
    %c0_i32_1 = arith.constant 0 : i32
    return %c0_i32, %c0_i32_0 : i32, i32
  }
  func.func @transform_5(%arg0: i32) -> (i32, i32, i32) {
    %c0_i32 = arith.constant 0 : i32
    %c0_i32_0 = arith.constant 0 : i32
    %c0_i32_1 = arith.constant 0 : i32
    return %arg0, %c0_i32, %c0_i32_0 : i32, i32, i32
  }
}

</mosaic_0001>

<llo_original>
// kernel: tpu_custom_call.1
$region0: #{tpu_custom_call.1}
  #allocation0 [shape = 'u32[]', space=smem, size = 0x4, offset = 0x4, fixed_abs, tag = 'smem constant byte address 0x4 - core index']
  #allocation1 [shape = 'u32[144,128]{1,0:T(1,128)}', space=vmem, size = 0x12000, scoped, tag = 'internal scratch']
  %s0 = inlined_call_operand.hbm [shape: f32[2,8,32], index: 0, kind: input, shape index: {}]
  %s1 = inlined_call_operand.vmem [shape: f32[2,1,32], index: 1, kind: input, shape index: {}]
  %s2 = inlined_call_operand.hbm [shape: f32[32,32], index: 2, kind: input, shape index: {}]
  %s3 = inlined_call_operand.hbm [shape: f32[32,32], index: 3, kind: input, shape index: {}]
  %s4 = inlined_call_operand.vmem [shape: f32[1,32], index: 4, kind: input, shape index: {}]
  %s5 = inlined_call_operand.hbm [shape: f32[2,1,8], index: 5, kind: output, shape index: {}]
  %s6 = sld [smem:[#allocation0]]
  $region65: #{tpu_custom_call.1} parent=0
    _
  %s8 = ssub.s32 1, %s6
  %s9 = scalar_select 0, %s8, %s6
  $region1: #{tpu_custom_call.1} parent=0
    #allocation2 [shape = 'u8[8192]{0}', space=vmem, size = 0x2000, scoped, tag = 'input window, operand 0']
    #allocation3 [shape = 's32[2]{0}', space=sflag, size = 0x8, scoped, tag = 'scoped memory for tpu_custom_call.1']
    #allocation4 [shape = 's32[2]{0}', space=sflag, size = 0x8, scoped, tag = 'scoped memory for tpu_custom_call.1']
    #allocation5 [shape = 'u8[16384]{0}', space=vmem, size = 0x4000, scoped, tag = 'input window, operand 2, single buffered']
    #allocation6 [shape = 's32[1]{0}', space=sflag, size = 0x4, scoped, tag = 'scoped memory for tpu_custom_call.1']
    #allocation7 [shape = 'u8[16384]{0}', space=vmem, size = 0x4000, scoped, tag = 'input window, operand 3, single buffered']
    #allocation8 [shape = 'u8[1024]{0}', space=vmem, size = 0x400, scoped, tag = 'output window, operand 0']
    %10 = vsyncpa [#allocation3], 0
    %s11 = scalar_lea.sflag [#allocation3], 1
    %12 = vsyncpa %s11, 0
    %13 = vsyncpa [#allocation6], 0
    %14 = vsyncpa [#allocation4], 0
    %s15 = scalar_lea.sflag [#allocation4], 1
    %16 = vsyncpa %s15, 0
    loop: start=0, step=1, limit=4
    $region2: #{tpu_custom_call.1} parent=1 // loop_pre_header
      _
    $region3: #{tpu_custom_call.1} parent=1 // loop_header
      %s18 = sphi 0, %s22
      %p19 = scmp.ge.s32.totalorder %s18, 4
      %s28 = sphi 0, %s30
      %s31 = sphi 0, %s28
      %s32 = sphi 0, %s31
      %s48 = sphi 0, %s32
      %s54 = sphi 0, %s56
      %s57 = sphi 0, %s54
      %s58 = sphi 0, %s57
      %s74 = sphi 0, %s58
      %s78 = sphi 0, %s78
      %s80 = sphi 0, %s78
      %s81 = sphi 0, %s80
      %s95 = sphi 0, %s81
      %s99 = sphi 0, %s99
      %s101 = sphi 0, %s99
      %s102 = sphi 0, %s101
      %s116 = sphi 0, %s102
      %s120 = sphi 0, %s120
      %s122 = sphi 0, %s120
      %s123 = sphi 0, %s122
      %s137 = sphi 0, %s123
      %s143 = sphi 0, %s145
      %s146 = sphi 0, %s143
      %s147 = sphi 0, %s146
      %s163 = sphi 0, %s147
    $region4: #{tpu_custom_call.1} parent=1 // loop_header_branch
      %21 = sbr.rel (%p19) target = $region8
    $region5: #{tpu_custom_call.1} parent=1 // loop_body
      %s23 = ssub.s32 %s18, 1
      %s24 = ssub.s32 %s18, 2
      %s25 = sadd.s32 %s18, 1
      %s26 = ssub.s32 %s18, %s25
      %p27 = scmp.eq.s32.totalorder %s26, 0
      %s29 = sadd.s32 %s28, 1
      %s30 = scalar_select %p27, %s28, %s29
      %p33 = pneg %p27
      %p34 = scmp.eq.s32.totalorder %s18, 1
      %p35 = por %p33, %p34
      %p36 = scmp.ne.s32.totalorder %s28, %s31
      %p37 = scmp.eq.s32.totalorder %s18, 0
      %p38 = por %p36, %p37
      %p39 = scmp.ne.s32.totalorder %s28, %s31
      %p40 = scmp.eq.s32.totalorder %s23, 1
      %p41 = por %p39, %p40
      %p42 = scmp.ne.s32.totalorder %s31, %s32
      %p43 = scmp.eq.s32.totalorder %s23, 0
      %p44 = por %p42, %p43
      %p45 = scmp.ne.s32.totalorder %s31, %s32
      %p46 = scmp.eq.s32.totalorder %s24, 1
      %p47 = por %p45, %p46
      %p49 = scmp.ne.s32.totalorder %s32, %s48
      %p50 = scmp.eq.s32.totalorder %s24, 0
      %p51 = por %p49, %p50
      %s52 = ssub.s32 %s18, %s25
      %p53 = scmp.eq.s32.totalorder %s52, 0
      %s55 = sadd.s32 %s54, 1
      %s56 = scalar_select %p53, %s54, %s55
      %p59 = pneg %p53
      %p60 = scmp.eq.s32.totalorder %s18, 1
      %p61 = por %p59, %p60
      %p62 = scmp.ne.s32.totalorder %s54, %s57
      %p63 = scmp.eq.s32.totalorder %s18, 0
      %p64 = por %p62, %p63
      %p65 = scmp.ne.s32.totalorder %s54, %s57
      %p66 = scmp.eq.s32.totalorder %s23, 1
      %p67 = por %p65, %p66
      %p68 = scmp.ne.s32.totalorder %s57, %s58
      %p69 = scmp.eq.s32.totalorder %s23, 0
      %p70 = por %p68, %p69
      %p71 = scmp.ne.s32.totalorder %s57, %s58
      %p72 = scmp.eq.s32.totalorder %s24, 1
      %p73 = por %p71, %p72
      %p75 = scmp.ne.s32.totalorder %s58, %s74
      %p76 = scmp.eq.s32.totalorder %s24, 0
      %p77 = por %p75, %p76
      %s79 = sadd.s32 %s78, 1
      %p82 = scmp.eq.s32.totalorder %s18, 1
      %p83 = scmp.ne.s32.totalorder %s78, %s80
      %p84 = scmp.eq.s32.totalorder %s18, 0
      %p85 = por %p83, %p84
      %p86 = scmp.ne.s32.totalorder %s78, %s80
      %p87 = scmp.eq.s32.totalorder %s23, 1
      %p88 = por %p86, %p87
      %p89 = scmp.ne.s32.totalorder %s80, %s81
      %p90 = scmp.eq.s32.totalorder %s23, 0
      %p91 = por %p89, %p90
      %p92 = scmp.ne.s32.totalorder %s80, %s81
      %p93 = scmp.eq.s32.totalorder %s24, 1
      %p94 = por %p92, %p93
      %p96 = scmp.ne.s32.totalorder %s81, %s95
      %p97 = scmp.eq.s32.totalorder %s24, 0
      %p98 = por %p96, %p97
      %s100 = sadd.s32 %s99, 1
      %p103 = scmp.eq.s32.totalorder %s18, 1
      %p104 = scmp.ne.s32.totalorder %s99, %s101
      %p105 = scmp.eq.s32.totalorder %s18, 0
      %p106 = por %p104, %p105
      %p107 = scmp.ne.s32.totalorder %s99, %s101
      %p108 = scmp.eq.s32.totalorder %s23, 1
      %p109 = por %p107, %p108
      %p110 = scmp.ne.s32.totalorder %s101, %s102
      %p111 = scmp.eq.s32.totalorder %s23, 0
      %p112 = por %p110, %p111
      %p113 = scmp.ne.s32.totalorder %s101, %s102
      %p114 = scmp.eq.s32.totalorder %s24, 1
      %p115 = por %p113, %p114
      %p117 = scmp.ne.s32.totalorder %s102, %s116
      %p118 = scmp.eq.s32.totalorder %s24, 0
      %p119 = por %p117, %p118
      %s121 = sadd.s32 %s120, 1
      %p124 = scmp.eq.s32.totalorder %s18, 1
      %p125 = scmp.ne.s32.totalorder %s120, %s122
      %p126 = scmp.eq.s32.totalorder %s18, 0
      %p127 = por %p125, %p126
      %p128 = scmp.ne.s32.totalorder %s120, %s122
      %p129 = scmp.eq.s32.totalorder %s23, 1
      %p130 = por %p128, %p129
      %p131 = scmp.ne.s32.totalorder %s122, %s123
      %p132 = scmp.eq.s32.totalorder %s23, 0
      %p133 = por %p131, %p132
      %p134 = scmp.ne.s32.totalorder %s122, %s123
      %p135 = scmp.eq.s32.totalorder %s24, 1
      %p136 = por %p134, %p135
      %p138 = scmp.ne.s32.totalorder %s123, %s137
      %p139 = scmp.eq.s32.totalorder %s24, 0
      %p140 = por %p138, %p139
      %s141 = ssub.s32 %s18, %s25
      %p142 = scmp.eq.s32.totalorder %s141, 0
      %s144 = sadd.s32 %s143, 1
      %s145 = scalar_select %p142, %s143, %s144
      %p148 = pneg %p142
      %p149 = scmp.eq.s32.totalorder %s18, 1
      %p150 = por %p148, %p149
      %p151 = scmp.ne.s32.totalorder %s143, %s146
      %p152 = scmp.eq.s32.totalorder %s18, 0
      %p153 = por %p151, %p152
      %p154 = scmp.ne.s32.totalorder %s143, %s146
      %p155 = scmp.eq.s32.totalorder %s23, 1
      %p156 = por %p154, %p155
      %p157 = scmp.ne.s32.totalorder %s146, %s147
      %p158 = scmp.eq.s32.totalorder %s23, 0
      %p159 = por %p157, %p158
      %p160 = scmp.ne.s32.totalorder %s146, %s147
      %p161 = scmp.eq.s32.totalorder %s24, 1
      %p162 = por %p160, %p161
      %p164 = scmp.ne.s32.totalorder %s147, %s163
      %p165 = scmp.eq.s32.totalorder %s24, 0
      %p166 = por %p164, %p165
      %p167 = scmp.le.s32.totalorder 1, %s18
      %p168 = scmp.lt.s32.totalorder %s18, 3
      %p169 = pnand %p167, %p168
      %p170 = pneg %p169
      // Predicated region
      $region9: #{tpu_custom_call.1} parent=5 // pred_check
        _
      $region10: #{tpu_custom_call.1} parent=5 // pred_check_branch
        %172 = sbr.rel (%p169) target = $region12
      $region11: #{tpu_custom_call.1} parent=5 // pred_region
        %s173 = ssub.s32 %s18, 1
        // Predicated region
        $region13: #{tpu_custom_call.1} parent=11 // pred_check
          %p174 = pneg %p91
        $region14: #{tpu_custom_call.1} parent=11 // pred_check_branch
          %176 = sbr.rel (%p174) target = $region16
        $region15: #{tpu_custom_call.1} parent=11 // pred_region
          %s178 = ssub.s32 512, 512
          %179 = vsyncadd [#allocation6], %s178
          %s180 = sshll.u32 [#allocation5], 4
          %s181 = int_to_ptr.vmem [resolvable:$true] %s180
          %186 = dma.hbm_to_vmem [thread:$0]  %s2, 512, %s181, [#allocation6], 128, 128, 8
        $region16: #{tpu_custom_call.1} parent=11 // pred_fallthru
          _
        // Predicated region
        $region17: #{tpu_custom_call.1} parent=11 // pred_check
          %p187 = pneg %p112
        $region18: #{tpu_custom_call.1} parent=11 // pred_check_branch
          %189 = sbr.rel (%p187) target = $region20
        $region19: #{tpu_custom_call.1} parent=11 // pred_region
          %s191 = ssub.s32 512, 512
          %192 = vsyncadd [#allocation6], %s191
          %s193 = sshll.u32 [#allocation7], 4
          %s194 = int_to_ptr.vmem [resolvable:$true] %s193
          %199 = dma.hbm_to_vmem [thread:$0]  %s3, 512, %s194, [#allocation6], 128, 128, 8
        $region20: #{tpu_custom_call.1} parent=11 // pred_fallthru
          _
        // Predicated region
        $region21: #{tpu_custom_call.1} parent=11 // pred_check
          %p200 = pneg %p133
        $region22: #{tpu_custom_call.1} parent=11 // pred_check_branch
          %202 = sbr.rel (%p200) target = $region24
        $region23: #{tpu_custom_call.1} parent=11 // pred_region
          _
        $region24: #{tpu_custom_call.1} parent=11 // pred_fallthru
          _
      $region12: #{tpu_custom_call.1} parent=5 // pred_fallthru
        _
      %p203 = scmp.lt.s32.totalorder %s18, 2
      // Predicated region
      $region25: #{tpu_custom_call.1} parent=5 // pred_check
        %p204 = pneg %p203
      $region26: #{tpu_custom_call.1} parent=5 // pred_check_branch
        %206 = sbr.rel (%p204) target = $region28
      $region27: #{tpu_custom_call.1} parent=5 // pred_region
        // Predicated region
        $region29: #{tpu_custom_call.1} parent=27 // pred_check
          %p207 = pneg %p38
        $region30: #{tpu_custom_call.1} parent=27 // pred_check_branch
          %209 = sbr.rel (%p207) target = $region32
        $region31: #{tpu_custom_call.1} parent=27 // pred_region
          %s210 = sand.u32 %s28, 1
          %s211 = scalar_lea.sflag [#allocation3], %s210
          %s212 = sand.u32 %s28, 1
          %s213 = smul.addr %s212, 8
          %s214 = scalar_lea.vmem [#allocation2], %s213
          %s216 = ssub.s32 128, 128
          %217 = vsyncadd %s211, %s216
          %s218 = smul.addr %s18, 128
          %s219 = scalar_lea.hbm %s0, %s218
          %s221 = sshll.u32 %s214, 4
          %s222 = int_to_ptr.vmem [resolvable:$true] %s221
          %224 = dma.hbm_to_vmem [thread:$0]  %s219, 128, %s222, %s211
        $region32: #{tpu_custom_call.1} parent=27 // pred_fallthru
          _
        // Predicated region
        $region33: #{tpu_custom_call.1} parent=27 // pred_check
          %p225 = pneg %p64
        $region34: #{tpu_custom_call.1} parent=27 // pred_check_branch
          %227 = sbr.rel (%p225) target = $region36
        $region35: #{tpu_custom_call.1} parent=27 // pred_region
          %p228 = scmp.lt.s32.totalorder %s18, 1
          %s229 = scalar_select %p228, %s18, 1
          %s230 = scalar_lea.vmem %s1, %s229
        $region36: #{tpu_custom_call.1} parent=27 // pred_fallthru
          _
      $region28: #{tpu_custom_call.1} parent=5 // pred_fallthru
        _
      %p231 = scmp.le.s32.totalorder 1, %s18
      %p232 = scmp.lt.s32.totalorder %s18, 3
      %p233 = pnand %p231, %p232
      %p234 = pneg %p233
      // Predicated region
      $region37: #{tpu_custom_call.1} parent=5 // pred_check
        _
      $region38: #{tpu_custom_call.1} parent=5 // pred_check_branch
        %236 = sbr.rel (%p233) target = $region40
      $region39: #{tpu_custom_call.1} parent=5 // pred_region
        %s237 = ssub.s32 %s18, 1
        %s238 = sand.u32 %s31, 1
        %s239 = scalar_lea.sflag [#allocation3], %s238
        %s240 = sand.u32 %s31, 1
        %s241 = smul.addr %s240, 8
        %s242 = scalar_lea.vmem [#allocation2], %s241
        // Predicated region
        $region41: #{tpu_custom_call.1} parent=39 // pred_check
          %p243 = pneg %p44
        $region42: #{tpu_custom_call.1} parent=39 // pred_check_branch
          %245 = sbr.rel (%p243) target = $region44
        $region43: #{tpu_custom_call.1} parent=39 // pred_region
          %246 = dma.done %s239, 128
        $region44: #{tpu_custom_call.1} parent=39 // pred_fallthru
          _
        // Predicated region
        $region45: #{tpu_custom_call.1} parent=39 // pred_check
          %p247 = pneg %p91
        $region46: #{tpu_custom_call.1} parent=39 // pred_check_branch
          %249 = sbr.rel (%p247) target = $region48
        $region47: #{tpu_custom_call.1} parent=39 // pred_region
          %250 = dma.done [#allocation6], 512
        $region48: #{tpu_custom_call.1} parent=39 // pred_fallthru
          _
        // Predicated region
        $region49: #{tpu_custom_call.1} parent=39 // pred_check
          %p251 = pneg %p112
        $region50: #{tpu_custom_call.1} parent=39 // pred_check_branch
          %253 = sbr.rel (%p251) target = $region52
        $region51: #{tpu_custom_call.1} parent=39 // pred_region
          %254 = dma.done [#allocation6], 512
        $region52: #{tpu_custom_call.1} parent=39 // pred_fallthru
          _
        %s255 = sand.u32 %s31, 1
        %s256 = scalar_lea.sflag [#allocation3], %s255
        %s257 = sand.u32 %s31, 1
        %s258 = smul.addr %s257, 8
        %s259 = scalar_lea.vmem [#allocation2], %s258
        %p260 = pneg %p44
        %p261 = pneg %p41
        %p262 = scmp.lt.s32.totalorder %s23, 1
        %s263 = scalar_select %p262, %s23, 1
        %s264 = scalar_lea.vmem %s1, %s263
        %p265 = pneg %p70
        %p266 = pneg %p67
        %p267 = pneg %p91
        %p268 = pneg %p88
        %p269 = pneg %p112
        %p270 = pneg %p109
        %p271 = pneg %p133
        %p272 = pneg %p130
        %p273 = pneg %p159
        %p274 = pneg %p156
        %s275 = sand.u32 %s146, 1
        %s276 = scalar_lea.sflag [#allocation4], %s275
        %s277 = sand.u32 %s146, 1
        %s278 = scalar_lea.vmem [#allocation8], %s277
        %p279 = scmp.lt.s32.totalorder %s23, 1
        %s280 = scalar_select %p279, %s23, 1
        %s281 = scalar_lea.vmem %s1, %s280
        %v282 = vld [vmem:[%s242] sm:$0xff]
        %v283 = vld [vmem:[#allocation5] sm:$0xff]
        %v284 = vld [vmem:[#allocation5 + $0x8] sm:$0xff]
        %v285 = vld [vmem:[#allocation5 + $0x10] sm:$0xff]
        %v286 = vld [vmem:[#allocation5 + $0x18] sm:$0xff]
        %v287 = vld [vmem:[%s281] sm:$0x1]
        %v288 = vld [vmem:[#allocation7] sm:$0xff]
        %v289 = vld [vmem:[#allocation7 + $0x8] sm:$0xff]
        %v290 = vld [vmem:[#allocation7 + $0x10] sm:$0xff]
        %v291 = vld [vmem:[#allocation7 + $0x18] sm:$0xff]
        %vm292 = vcmask 261120
        %v294 = vsel %vm292, %v287, 0
        %296 = vmatprep.subr.mxu0 0.0
        %297 = vmatpush1.msra.mxu0 %v288
        %298 = vmatprep.subr.mxu0 0.0
        %299 = vmatpush1.msra.mxu0 %v289
        %300 = vmatprep.subr.mxu0 0.0
        %301 = vmatpush1.msra.mxu0 %v290
        %302 = vmatprep.subr.mxu0 0.0
        %303 = vmatpush1.msra.mxu0 %v291
        %304 = vmatprep.subr.mxu0 0.0
        %305 = vmatpush1.msra.mxu0 0.0
        %306 = vmatprep.subr.mxu0 0.0
        %307 = vmatpush1.msra.mxu0 0.0
        %308 = vmatprep.subr.mxu0 0.0
        %309 = vmatpush1.msra.mxu0 0.0
        %310 = vmatprep.subr.mxu0 0.0
        %311 = vmatpush1.msra.mxu0 0.0
        %312 = vmatprep.subr.mxu0 0.0
        %313 = vmatpush1.msra.mxu0 0.0
        %314 = vmatprep.subr.mxu0 0.0
        %315 = vmatpush1.msra.mxu0 0.0
        %316 = vmatprep.subr.mxu0 0.0
        %317 = vmatpush1.msra.mxu0 0.0
        %318 = vmatprep.subr.mxu0 0.0
        %319 = vmatpush1.msra.mxu0 0.0
        %320 = vmatprep.subr.mxu0 0.0
        %321 = vmatpush1.msra.mxu0 0.0
        %322 = vmatprep.subr.mxu0 0.0
        %323 = vmatpush1.msra.mxu0 0.0
        %324 = vmatprep.subr.mxu0 0.0
        %325 = vmatpush1.msra.mxu0 0.0
        %326 = vmatprep.subr.mxu0 0.0
        %327 = vmatpush1.msra.mxu0 0.0
        %328 = vmatprep.subr.mxu0 0.0
        %329 = vmatpush1.msra.mxu0 0.0
        %330 = vmatprep.subr.mxu0 0.0
        %331 = vmatpush1.msra.mxu0 0.0
        %332 = vmatprep.subr.mxu0 0.0
        %333 = vmatpush1.msra.mxu0 0.0
        %334 = vmatprep.subr.mxu0 0.0
        %335 = vmatpush1.msra.mxu0 0.0
        %336 = vmatprep.subr.mxu0 0.0
        %337 = vmatpush1.msra.mxu0 0.0
        %338 = vmatprep.subr.mxu0 0.0
        %339 = vmatpush1.msra.mxu0 0.0
        %340 = vmatprep.subr.mxu0 0.0
        %341 = vmatpush1.msra.mxu0 0.0
        %342 = vmatprep.subr.mxu0 0.0
        %343 = vmatpush1.msra.mxu0 0.0
        %344 = vmatprep.subr.mxu0 0.0
        %345 = vmatpush1.msra.mxu0 0.0
        %346 = vmatprep.subr.mxu0 0.0
        %347 = vmatpush1.msra.mxu0 0.0
        %348 = vmatprep.subr.mxu0 0.0
        %349 = vmatpush1.msra.mxu0 0.0
        %350 = vmatprep.subr.mxu0 0.0
        %351 = vmatpush1.msra.mxu0 0.0
        %352 = vmatprep.subr.mxu0 0.0
        %353 = vmatpush1.msra.mxu0 0.0
        %354 = vmatprep.subr.mxu0 0.0
        %355 = vmatpush1.msra.mxu0 0.0
        %356 = vmatprep.subr.mxu0 0.0
        %357 = vmatpush1.msra.mxu0 0.0
        %358 = vmatprep.subr.mxu0 0.0
        %359 = vmatpush1.msra.mxu0 0.0
        %360 = vmatprep.mubr.f32.mxu0 0.0
        %361 = vmatmul.mubr.f32.gmra.mrb[0].mxu0 %v294
        %v362 = vpop.f32.mrb[0].mxu0
        %v363 = vadd.f32 0.0, %v362
        %v364 = vpop.f32.mrb[0].mxu0
        %365 = vdwg.mxu0
        %v366 = vlaneseq
        %v367 = vshrl.u32 %v366, 7
        %v368 = vsub.s32 0, %v367
        %v369 = vrot.slane %v363, %v368
        %v371 = vsel %vm292, %v282, 0
        %373 = vmatprep.subr.mxu0 0.0
        %374 = vmatpush1.msra.mxu0 %v283
        %375 = vmatprep.subr.mxu0 0.0
        %376 = vmatpush1.msra.mxu0 %v284
        %377 = vmatprep.subr.mxu0 0.0
        %378 = vmatpush1.msra.mxu0 %v285
        %379 = vmatprep.subr.mxu0 0.0
        %380 = vmatpush1.msra.mxu0 %v286
        %381 = vmatprep.subr.mxu0 0.0
        %382 = vmatpush1.msra.mxu0 0.0
        %383 = vmatprep.subr.mxu0 0.0
        %384 = vmatpush1.msra.mxu0 0.0
        %385 = vmatprep.subr.mxu0 0.0
        %386 = vmatpush1.msra.mxu0 0.0
        %387 = vmatprep.subr.mxu0 0.0
        %388 = vmatpush1.msra.mxu0 0.0
        %389 = vmatprep.subr.mxu0 0.0
        %390 = vmatpush1.msra.mxu0 0.0
        %391 = vmatprep.subr.mxu0 0.0
        %392 = vmatpush1.msra.mxu0 0.0
        %393 = vmatprep.subr.mxu0 0.0
        %394 = vmatpush1.msra.mxu0 0.0
        %395 = vmatprep.subr.mxu0 0.0
        %396 = vmatpush1.msra.mxu0 0.0
        %397 = vmatprep.subr.mxu0 0.0
        %398 = vmatpush1.msra.mxu0 0.0
        %399 = vmatprep.subr.mxu0 0.0
        %400 = vmatpush1.msra.mxu0 0.0
        %401 = vmatprep.subr.mxu0 0.0
        %402 = vmatpush1.msra.mxu0 0.0
        %403 = vmatprep.subr.mxu0 0.0
        %404 = vmatpush1.msra.mxu0 0.0
        %405 = vmatprep.subr.mxu0 0.0
        %406 = vmatpush1.msra.mxu0 0.0
        %407 = vmatprep.subr.mxu0 0.0
        %408 = vmatpush1.msra.mxu0 0.0
        %409 = vmatprep.subr.mxu0 0.0
        %410 = vmatpush1.msra.mxu0 0.0
        %411 = vmatprep.subr.mxu0 0.0
        %412 = vmatpush1.msra.mxu0 0.0
        %413 = vmatprep.subr.mxu0 0.0
        %414 = vmatpush1.msra.mxu0 0.0
        %415 = vmatprep.subr.mxu0 0.0
        %416 = vmatpush1.msra.mxu0 0.0
        %417 = vmatprep.subr.mxu0 0.0
        %418 = vmatpush1.msra.mxu0 0.0
        %419 = vmatprep.subr.mxu0 0.0
        %420 = vmatpush1.msra.mxu0 0.0
        %421 = vmatprep.subr.mxu0 0.0
        %422 = vmatpush1.msra.mxu0 0.0
        %423 = vmatprep.subr.mxu0 0.0
        %424 = vmatpush1.msra.mxu0 0.0
        %425 = vmatprep.subr.mxu0 0.0
        %426 = vmatpush1.msra.mxu0 0.0
        %427 = vmatprep.subr.mxu0 0.0
        %428 = vmatpush1.msra.mxu0 0.0
        %429 = vmatprep.subr.mxu0 0.0
        %430 = vmatpush1.msra.mxu0 0.0
        %431 = vmatprep.subr.mxu0 0.0
        %432 = vmatpush1.msra.mxu0 0.0
        %433 = vmatprep.subr.mxu0 0.0
        %434 = vmatpush1.msra.mxu0 0.0
        %435 = vmatprep.subr.mxu0 0.0
        %436 = vmatpush1.msra.mxu0 0.0
        %437 = vmatprep.mubr.f32.mxu0 0.0
        %438 = vmatmul.mubr.f32.gmra.mrb[0].mxu0 %v371
        %v439 = vpop.f32.mrb[0].mxu0
        %v440 = vadd.f32 %v369, %v439
        %v441 = vpop.f32.mrb[0].mxu0
        %442 = vdwg.mxu0
        %v443 = vtanh.pop %v440
        %v444 = vld [vmem:[%s4] sm:$0x1]
        %v446 = vsel %vm292, %v444, 0
        %v449 = vsel %vm292, %v443, 0
        %451 = vmatprep.subr.mxu0 0.0
        %452 = vmatpush1.xpose.msra.mxu0 %v449
        %453 = vmatprep.subr.mxu0 0.0
        %454 = vmatpush1.xpose.msra.mxu0 0.0
        %455 = vmatprep.subr.mxu0 0.0
        %456 = vmatpush1.xpose.msra.mxu0 0.0
        %457 = vmatprep.subr.mxu0 0.0
        %458 = vmatpush1.xpose.msra.mxu0 0.0
        %459 = vmatprep.subr.mxu0 0.0
        %460 = vmatpush1.xpose.msra.mxu0 0.0
        %461 = vmatprep.subr.mxu0 0.0
        %462 = vmatpush1.xpose.msra.mxu0 0.0
        %463 = vmatprep.subr.mxu0 0.0
        %464 = vmatpush1.xpose.msra.mxu0 0.0
        %465 = vmatprep.subr.mxu0 0.0
        %466 = vmatpush1.xpose.msra.mxu0 0.0
        %467 = vmatprep.subr.mxu0 0.0
        %468 = vmatpush1.xpose.msra.mxu0 0.0
        %469 = vmatprep.subr.mxu0 0.0
        %470 = vmatpush1.xpose.msra.mxu0 0.0
        %471 = vmatprep.subr.mxu0 0.0
        %472 = vmatpush1.xpose.msra.mxu0 0.0
        %473 = vmatprep.subr.mxu0 0.0
        %474 = vmatpush1.xpose.msra.mxu0 0.0
        %475 = vmatprep.subr.mxu0 0.0
        %476 = vmatpush1.xpose.msra.mxu0 0.0
        %477 = vmatprep.subr.mxu0 0.0
        %478 = vmatpush1.xpose.msra.mxu0 0.0
        %479 = vmatprep.subr.mxu0 0.0
        %480 = vmatpush1.xpose.msra.mxu0 0.0
        %481 = vmatprep.subr.mxu0 0.0
        %482 = vmatpush1.xpose.msra.mxu0 0.0
        %483 = vmatprep.subr.mxu0 0.0
        %484 = vmatpush1.xpose.msra.mxu0 0.0
        %485 = vmatprep.subr.mxu0 0.0
        %486 = vmatpush1.xpose.msra.mxu0 0.0
        %487 = vmatprep.subr.mxu0 0.0
        %488 = vmatpush1.xpose.msra.mxu0 0.0
        %489 = vmatprep.subr.mxu0 0.0
        %490 = vmatpush1.xpose.msra.mxu0 0.0
        %491 = vmatprep.subr.mxu0 0.0
        %492 = vmatpush1.xpose.msra.mxu0 0.0
        %493 = vmatprep.subr.mxu0 0.0
        %494 = vmatpush1.xpose.msra.mxu0 0.0
        %495 = vmatprep.subr.mxu0 0.0
        %496 = vmatpush1.xpose.msra.mxu0 0.0
        %497 = vmatprep.subr.mxu0 0.0
        %498 = vmatpush1.xpose.msra.mxu0 0.0
        %499 = vmatprep.subr.mxu0 0.0
        %500 = vmatpush1.xpose.msra.mxu0 0.0
        %501 = vmatprep.subr.mxu0 0.0
        %502 = vmatpush1.xpose.msra.mxu0 0.0
        %503 = vmatprep.subr.mxu0 0.0
        %504 = vmatpush1.xpose.msra.mxu0 0.0
        %505 = vmatprep.subr.mxu0 0.0
        %506 = vmatpush1.xpose.msra.mxu0 0.0
        %507 = vmatprep.subr.mxu0 0.0
        %508 = vmatpush1.xpose.msra.mxu0 0.0
        %509 = vmatprep.subr.mxu0 0.0
        %510 = vmatpush1.xpose.msra.mxu0 0.0
        %511 = vmatprep.subr.mxu0 0.0
        %512 = vmatpush1.xpose.msra.mxu0 0.0
        %513 = vmatprep.subr.mxu0 0.0
        %514 = vmatpush1.xpose.msra.mxu0 0.0
        %515 = vmatprep.mubr.f32.mxu0 0.0
        %516 = vmatmul.mubr.f32.gmra.mrb[0].mxu0 %v446
        %v517 = vpop.f32.mrb[0].mxu0
        %v518 = vadd.f32 0.0, %v517
        %v519 = vpop.f32.mrb[0].mxu0
        %520 = vdwg.mxu0
        %vm521 = vcmask 57344
        %v522 = vsel %vm521, %v518, -inf
        %523 = vmax.xlane.f32.xlu0 %v522
        %v524 = vpop.xlane.xlu0 %523
        %v525 = vsub.f32 %v518, %v524
        %v526 = vmul.f32 %v525, 1.442695
        %v527 = vpow.pop %v526
        %v528 = vsel %vm521, %v527, 0.0
        %529 = vadd.xlane.f32.xlu0 %v528
        %v530 = vpop.xlane.xlu0 %529
        %v531 = vrcp.pop %v530
        %v532 = vmul.f32 %v527, %v531
        %533 = vst.msk [vmem:[%s278] sm:$0x1] %vm521, %v532
        %s534 = sand.u32 %s146, 1
        %s535 = scalar_lea.sflag [#allocation4], %s534
        %s536 = sand.u32 %s146, 1
        %s537 = scalar_lea.vmem [#allocation8], %s536
        // Predicated region
        $region53: #{tpu_custom_call.1} parent=39 // pred_check
          %p538 = pneg %p156
        $region54: #{tpu_custom_call.1} parent=39 // pred_check_branch
          %540 = sbr.rel (%p538) target = $region56
        $region55: #{tpu_custom_call.1} parent=39 // pred_region
          %s542 = ssub.s32 16, 16
          %543 = vsyncadd %s535, %s542
          %s544 = smul.addr %s23, 16
          %s545 = scalar_lea.hbm %s5, %s544
          %s547 = sshll.u32 %s537, 4
          %s548 = int_to_ptr.vmem [resolvable:$true] %s547
          %550 = dma.vmem_to_hbm [thread:$0]  %s548, 16, %s545, %s535
        $region56: #{tpu_custom_call.1} parent=39 // pred_fallthru
          _
      $region40: #{tpu_custom_call.1} parent=5 // pred_fallthru
        _
      %p551 = scmp.le.s32.totalorder 2, %s18
      // Predicated region
      $region57: #{tpu_custom_call.1} parent=5 // pred_check
        %p552 = pneg %p551
      $region58: #{tpu_custom_call.1} parent=5 // pred_check_branch
        %554 = sbr.rel (%p552) target = $region60
      $region59: #{tpu_custom_call.1} parent=5 // pred_region
        %s555 = ssub.s32 %s18, 2
        // Predicated region
        $region61: #{tpu_custom_call.1} parent=59 // pred_check
          %p556 = pneg %p162
        $region62: #{tpu_custom_call.1} parent=59 // pred_check_branch
          %558 = sbr.rel (%p556) target = $region64
        $region63: #{tpu_custom_call.1} parent=59 // pred_region
          %s559 = sand.u32 %s147, 1
          %s560 = scalar_lea.sflag [#allocation4], %s559
          %s561 = sand.u32 %s147, 1
          %s562 = scalar_lea.vmem [#allocation8], %s561
          %563 = dma.done %s560, 16
        $region64: #{tpu_custom_call.1} parent=59 // pred_fallthru
          _
      $region60: #{tpu_custom_call.1} parent=5 // pred_fallthru
        _
    $region6: #{tpu_custom_call.1} parent=1 // loop_footer
      %s22 = sadd.s32 1, %s18
    $region7: #{tpu_custom_call.1} parent=1 // loop_footer_branch
      %17 = sbr.rel target = $region3
    $region8: #{tpu_custom_call.1} parent=1 // loop_exit
      _
    %564 = vsyncpa [#allocation3], 1
    %s565 = scalar_lea.sflag [#allocation3], 1
    %566 = vsyncpa %s565, 1
    %567 = vsyncpa [#allocation6], 1
    %568 = vsyncpa [#allocation4], 1
    %s569 = scalar_lea.sflag [#allocation4], 1
    %570 = vsyncpa %s569, 1

</llo_original>
